<compile_context>
chip_gen: v6e
topology: v6e:2x2x1
jax: 0.10.0
libtpu: 0.0.40
codegen_flags: <defaults>
</compile_context>

<pallas_src>
from functools import partial

import jax
import jax.numpy as jnp
from jax import lax
from jax.experimental import pallas as pl
from jax.experimental.pallas import tpu as pltpu

BN_EPS = 1e-5


def _round_up(x, m):
    return ((x + m - 1) // m) * m


def _pick_k_tile(c_in_pad, k_tile):
    """Largest multiple of 128 <= k_tile that divides c_in_pad."""
    tk = max(128, (min(k_tile, c_in_pad) // 128) * 128)
    while c_in_pad % tk:
        tk -= 128
    return tk


def _linear_relu_bn_kernel(x_ref, wt_ref, p_ref, o_ref, acc_ref):
    # x_ref  : (N, tk)       full batch, one K tile of (padded) input features
    # wt_ref : (tk, tn)      pre-transposed weight tile
    # p_ref  : (3, tn)       rows = [bias, gamma, beta]
    # o_ref  : (N, tn)       output tile (resident across the K axis)
    # acc_ref: (N, tn) f32   matmul accumulator scratch
    k = pl.program_id(1)

    @pl.when(k == 0)
    def _init():
        acc_ref[...] = jnp.zeros_like(acc_ref)

    # MXU matmul, f32 accumulation (inputs may be bf16-streamed).
    acc_ref[...] += jnp.dot(x_ref[...], wt_ref[...],
                            preferred_element_type=jnp.float32)

    @pl.when(k == pl.num_programs(1) - 1)
    def _finalize():
        params = p_ref[...].astype(jnp.float32)
        bias = params[0:1, :]
        gamma = params[1:2, :]
        beta = params[2:3, :]

        # Bias + ReLU.
        y = jnp.maximum(acc_ref[...] + bias, 0.0)

        # BatchNorm1d (training mode): per-feature batch mean / biased var.
        # Two-pass variance for numerical safety; batch lives in one block.
        inv_n = jnp.float32(1.0 / y.shape[0])
        mean = jnp.sum(y, axis=0, keepdims=True) * inv_n         # (1, tn)
        centered = y - mean
        var = jnp.sum(centered * centered, axis=0, keepdims=True) * inv_n

        # Folded affine epilogue: single FMA over the (N, tn) tile.
        scale = gamma * lax.rsqrt(var + BN_EPS)                  # EUP rsqrt
        shift = beta - scale * mean
        o_ref[...] = (y * scale + shift).astype(o_ref.dtype)


def prepare_linear_relu_bn_params(weight, bias, gamma, beta, *,
                                  compute_dtype=jnp.float32,
                                  feature_tile=128):
    """Hoisted, call-once parameter prep (transpose/pad/stack).

    weight: (C_out, C_in) torch layout; bias/gamma/beta: (C_out,).
    Returns (w_t_padded, fused_params, c_out).
    """
    c_out, c_in = weight.shape
    c_in_pad = _round_up(c_in, 128)
    c_out_pad = _round_up(c_out, feature_tile)

    w_t = jnp.pad(jnp.transpose(weight),
                  ((0, c_in_pad - c_in), (0, c_out_pad - c_out)))
    w_t = w_t.astype(compute_dtype)                       # bf16 streaming option

    params = jnp.stack([bias, gamma, beta]).astype(jnp.float32)   # (3, C_out)
    params = jnp.pad(params, ((0, 0), (0, c_out_pad - c_out)))    # (3, C_out_pad)
    return w_t, params, c_out


@partial(jax.jit,
         static_argnames=("c_out", "out_dtype", "feature_tile", "k_tile"))
def linear_relu_bn_apply(x, w_t, params, *, c_out,
                         out_dtype=jnp.float32,
                         feature_tile=128, k_tile=512):
    """x: (N, C_in); w_t/params from prepare_linear_relu_bn_params."""
    n, c_in = x.shape
    c_in_pad, c_out_pad = w_t.shape
    tn = feature_tile
    tk = _pick_k_tile(c_in_pad, k_tile)
    n_j = c_out_pad // tn
    n_k = c_in_pad // tk

    # Pad + cast x to the streamed compute dtype (no-ops when already aligned).
    x_p = x if c_in_pad == c_in else jnp.pad(x, ((0, 0), (0, c_in_pad - c_in)))
    x_p = x_p.astype(w_t.dtype)

    # Deepen weight-tile buffering only when the pipeline actually has steps
    # to hide (grid > 1) and per-step compute is tiny (small N).
    w_spec_kwargs = {}
    if n_j * n_k > 1 and n <= 128:
        w_spec_kwargs = dict(pipeline_mode=pl.Buffered(3))

    out = pl.pallas_call(
        _linear_relu_bn_kernel,
        out_shape=jax.ShapeDtypeStruct((n, c_out_pad), out_dtype),
        grid=(n_j, n_k),                                   # reduction axis last
        in_specs=[
            pl.BlockSpec((n, tk), lambda j, k: (0, k)),    # full batch, K tile
            pl.BlockSpec((tk, tn), lambda j, k: (k, j),    # W^T tile
                         **w_spec_kwargs),
            pl.BlockSpec((3, tn), lambda j, k: (0, j)),    # fused bias/gamma/beta
        ],
        out_specs=pl.BlockSpec((n, tn), lambda j, k: (0, j)),
        scratch_shapes=[pltpu.VMEM((n, tn), jnp.float32)], # matmul accumulator
        compiler_params=pltpu.CompilerParams(
            dimension_semantics=("parallel", "arbitrary"),
            # Tiny footprint at these shapes; raise toward ~64-100 MiB on
            # v5e/v6e (keep <= ~48 MiB on v7x) when N / C_in grow.
            vmem_limit_bytes=32 * 1024 * 1024,
        ),
    )(x_p, w_t, params)

    if c_out_pad != c_out:                                 # skip when aligned
        out = out[:, :c_out]
    return out


def linear_relu_bn(x, weight, bias, gamma, beta, *,
                   compute_dtype=jnp.float32, out_dtype=jnp.float32):
    """One-shot convenience wrapper (prep + apply)."""
    w_t, params, c_out = prepare_linear_relu_bn_params(
        weight, bias, gamma, beta, compute_dtype=compute_dtype)
    return linear_relu_bn_apply(x, w_t, params, c_out=c_out,
                                out_dtype=out_dtype)


def _reference(x, weight, bias, gamma, beta):
    y = x @ weight.T + bias
    y = jnp.maximum(y, 0.0)
    mean = jnp.mean(y, axis=0, keepdims=True)
    var = jnp.mean((y - mean) ** 2, axis=0, keepdims=True)
    return gamma * (y - mean) * lax.rsqrt(var + BN_EPS) + beta


if __name__ == "__main__":
    # Small shapes consistent with the module: batch=8, in=32, out=32.
    N, C_IN, C_OUT = 8, 32, 32

    key = jax.random.PRNGKey(0)
    kx, kw, kb, kg, kbe = jax.random.split(key, 5)

    x = jax.random.normal(kx, (N, C_IN), dtype=jnp.float32)
    bound = 1.0 / (C_IN ** 0.5)
    weight = jax.random.uniform(kw, (C_OUT, C_IN), jnp.float32, -bound, bound)
    bias = jax.random.uniform(kb, (C_OUT,), jnp.float32, -bound, bound)
    gamma = jnp.ones((C_OUT,), jnp.float32) + 0.1 * jax.random.normal(kg, (C_OUT,))
    beta = 0.1 * jax.random.normal(kbe, (C_OUT,))

    # --- f32 compute path: exact forward semantics of the PyTorch module ---
    w_t32, params32, c_out = prepare_linear_relu_bn_params(
        weight, bias, gamma, beta, compute_dtype=jnp.float32)
    out32 = jax.block_until_ready(
        linear_relu_bn_apply(x, w_t32, params32, c_out=c_out))
    ref32 = _reference(x, weight, bias, gamma, beta)
    assert out32.shape == (N, C_OUT)
    assert jnp.allclose(out32, ref32, atol=1e-4, rtol=1e-4)

    # --- bf16-streamed MXU path (weight-bandwidth optimization) ---
    w_t16, params16, _ = prepare_linear_relu_bn_params(
        weight, bias, gamma, beta, compute_dtype=jnp.bfloat16)
    out16 = jax.block_until_ready(
        linear_relu_bn_apply(x, w_t16, params16, c_out=c_out))
    x_r = x.astype(jnp.bfloat16).astype(jnp.float32)
    w_r = weight.astype(jnp.bfloat16).astype(jnp.float32)
    ref16 = _reference(x_r, w_r, bias, gamma, beta)
    assert out16.shape == (N, C_OUT)
    assert jnp.allclose(out16, ref16, atol=1e-3, rtol=1e-3)

    print("KERNEL_OK")
</pallas_src>

<mosaic_0001>
module attributes {stable_mosaic.version = 11 : i64} {
  func.func @_linear_relu_bn_kernel(%arg0: i32, %arg1: i32, %arg2: memref<8x128xf32, #tpu.memory_space<vmem>>, %arg3: memref<128x128xf32, #tpu.memory_space<vmem>>, %arg4: memref<3x128xf32, #tpu.memory_space<vmem>>, %arg5: memref<8x128xf32, #tpu.memory_space<vmem>>, %arg6: memref<8x128xf32, #tpu.memory_space<vmem>>) attributes {dimension_semantics = [#tpu.dimension_semantics<parallel>, #tpu.dimension_semantics<arbitrary>], iteration_bounds = array<i64: 1, 1>, scalar_prefetch = 0 : i64, scratch_operands = 1 : i64, tpu.core_type = #tpu.core_type<tc>, window_params = [{transform_indices = @transform_0, window_bounds = array<i64: 8, 128>}, {transform_indices = @transform_1, window_bounds = array<i64: 128, 128>}, {transform_indices = @transform_2, window_bounds = array<i64: 3, 128>}, {transform_indices = @transform_3, window_bounds = array<i64: 8, 128>}]} {
    %c0_i32 = arith.constant 0 : i32
    %0 = arith.cmpi eq, %arg1, %c0_i32 : i32
    %1 = arith.extui %0 : i1 to i32
    %c0_i32_0 = arith.constant 0 : i32
    %2 = arith.cmpi ne, %1, %c0_i32_0 : i32
    scf.if %2 {
      %cst_10 = arith.constant 0.000000e+00 : f32
      %12 = vector.broadcast %cst_10 : f32 to vector<8x128xf32>
      %c0_11 = arith.constant 0 : index
      %c0_12 = arith.constant 0 : index
      %13 = vector.load %arg6[%c0_11, %c0_12] : memref<8x128xf32, #tpu.memory_space<vmem>>, vector<8x128xf32>
      tpu.vector_store %arg6[%c0_11, %c0_12], %12 {strides = array<i32>} : memref<8x128xf32, #tpu.memory_space<vmem>>, vector<8x128xf32>,
    } else {
    }
    %c0 = arith.constant 0 : index
    %c0_1 = arith.constant 0 : index
    %3 = vector.load %arg6[%c0, %c0_1] : memref<8x128xf32, #tpu.memory_space<vmem>>, vector<8x128xf32>
    %c0_2 = arith.constant 0 : index
    %c0_3 = arith.constant 0 : index
    %4 = vector.load %arg2[%c0_2, %c0_3] : memref<8x128xf32, #tpu.memory_space<vmem>>, vector<8x128xf32>
    %c0_4 = arith.constant 0 : index
    %c0_5 = arith.constant 0 : index
    %5 = vector.load %arg3[%c0_4, %c0_5] : memref<128x128xf32, #tpu.memory_space<vmem>>, vector<128x128xf32>
    %cst = arith.constant dense<0.000000e+00> : vector<8x128xf32>
    %6 = tpu.matmul %4, %5, %cst {dimension_numbers = #tpu.dot_dimension_numbers<[1], [0], [0], [1], [0, 0, 1, 1], [], []>} : vector<8x128xf32>, vector<128x128xf32>, vector<8x128xf32> -> vector<8x128xf32>
    %7 = arith.addf %3, %6 : vector<8x128xf32>
    %c0_6 = arith.constant 0 : index
    %c0_7 = arith.constant 0 : index
    %8 = vector.load %arg6[%c0_6, %c0_7] : memref<8x128xf32, #tpu.memory_space<vmem>>, vector<8x128xf32>
    tpu.vector_store %arg6[%c0_6, %c0_7], %7 {strides = array<i32>} : memref<8x128xf32, #tpu.memory_space<vmem>>, vector<8x128xf32>,
    %c0_i32_8 = arith.constant 0 : i32
    %9 = arith.cmpi eq, %arg1, %c0_i32_8 : i32
    %10 = arith.extui %9 : i1 to i32
    %c0_i32_9 = arith.constant 0 : i32
    %11 = arith.cmpi ne, %10, %c0_i32_9 : i32
    scf.if %11 {
      %c0_10 = arith.constant 0 : index
      %c0_11 = arith.constant 0 : index
      %12 = vector.load %arg4[%c0_10, %c0_11] : memref<3x128xf32, #tpu.memory_space<vmem>>, vector<3x128xf32>
      %13 = vector.extract_strided_slice %12 {offsets = [0, 0], sizes = [1, 128], strides = [1, 1]} : vector<3x128xf32> to vector<1x128xf32>
      %14 = vector.extract_strided_slice %12 {offsets = [1, 0], sizes = [1, 128], strides = [1, 1]} : vector<3x128xf32> to vector<1x128xf32>
      %15 = vector.extract_strided_slice %12 {offsets = [2, 0], sizes = [1, 128], strides = [1, 1]} : vector<3x128xf32> to vector<1x128xf32>
      %c0_12 = arith.constant 0 : index
      %c0_13 = arith.constant 0 : index
      %16 = vector.load %arg6[%c0_12, %c0_13] : memref<8x128xf32, #tpu.memory_space<vmem>>, vector<8x128xf32>
      %17 = vector.broadcast %13 : vector<1x128xf32> to vector<8x128xf32>
      %18 = arith.addf %16, %17 : vector<8x128xf32>
      %cst_14 = arith.constant 0.000000e+00 : f32
      %19 = vector.broadcast %cst_14 : f32 to vector<8x128xf32>
      %20 = arith.maximumf %18, %19 : vector<8x128xf32>
      %cst_15 = arith.constant dense<0.000000e+00> : vector<128xf32>
      %21 = vector.multi_reduction <add>, %20, %cst_15 [0] : vector<8x128xf32> to vector<128xf32>
      %22 = vector.shape_cast %21 : vector<128xf32> to vector<1x128xf32>
      %cst_16 = arith.constant 1.250000e-01 : f32
      %23 = vector.broadcast %cst_16 : f32 to vector<1x128xf32>
      %24 = arith.mulf %22, %23 : vector<1x128xf32>
      %25 = vector.broadcast %24 : vector<1x128xf32> to vector<8x128xf32>
      %26 = arith.subf %20, %25 : vector<8x128xf32>
      %27 = arith.mulf %26, %26 : vector<8x128xf32>
      %cst_17 = arith.constant dense<0.000000e+00> : vector<128xf32>
      %28 = vector.multi_reduction <add>, %27, %cst_17 [0] : vector<8x128xf32> to vector<128xf32>
      %29 = vector.shape_cast %28 : vector<128xf32> to vector<1x128xf32>
      %cst_18 = arith.constant 1.250000e-01 : f32
      %30 = vector.broadcast %cst_18 : f32 to vector<1x128xf32>
      %31 = arith.mulf %29, %30 : vector<1x128xf32>
      %cst_19 = arith.constant 9.99999974E-6 : f32
      %32 = vector.broadcast %cst_19 : f32 to vector<1x128xf32>
      %33 = arith.addf %31, %32 : vector<1x128xf32>
      %34 = math.rsqrt %33 : vector<1x128xf32>
      %35 = arith.mulf %14, %34 : vector<1x128xf32>
      %36 = arith.mulf %35, %24 : vector<1x128xf32>
      %37 = arith.subf %15, %36 : vector<1x128xf32>
      %38 = vector.broadcast %35 : vector<1x128xf32> to vector<8x128xf32>
      %39 = arith.mulf %20, %38 : vector<8x128xf32>
      %40 = vector.broadcast %37 : vector<1x128xf32> to vector<8x128xf32>
      %41 = arith.addf %39, %40 : vector<8x128xf32>
      %c0_20 = arith.constant 0 : index
      %c0_21 = arith.constant 0 : index
      %42 = vector.load %arg5[%c0_20, %c0_21] : memref<8x128xf32, #tpu.memory_space<vmem>>, vector<8x128xf32>
      tpu.vector_store %arg5[%c0_20, %c0_21], %41 {strides = array<i32>} : memref<8x128xf32, #tpu.memory_space<vmem>>, vector<8x128xf32>,
    } else {
    }
    return
  }
  func.func @transform_0(%arg0: i32, %arg1: i32) -> (i32, i32) {
    %c0_i32 = arith.constant 0 : i32
    %c0_i32_0 = arith.constant 0 : i32
    return %c0_i32, %arg1 : i32, i32
  }
  func.func @transform_1(%arg0: i32, %arg1: i32) -> (i32, i32) {
    %c0_i32 = arith.constant 0 : i32
    return %arg1, %arg0 : i32, i32
  }
  func.func @transform_2(%arg0: i32, %arg1: i32) -> (i32, i32) {
    %c0_i32 = arith.constant 0 : i32
    %c0_i32_0 = arith.constant 0 : i32
    return %c0_i32, %arg0 : i32, i32
  }
  func.func @transform_3(%arg0: i32, %arg1: i32) -> (i32, i32) {
    %c0_i32 = arith.constant 0 : i32
    %c0_i32_0 = arith.constant 0 : i32
    return %c0_i32, %arg0 : i32, i32
  }
}

</mosaic_0001>

<llo_original>
// kernel: linear_relu_bn_apply.1
$region0: #{linear_relu_bn_apply.1}
  #allocation0 [shape = 'u32[]', space=smem, size = 0x4, offset = 0x4, fixed_abs, tag = 'smem constant byte address 0x4 - core index']
  #allocation1 [shape = 'u32[144,128]{1,0:T(1,128)}', space=vmem, size = 0x12000, scoped, tag = 'internal scratch']
  #allocation2 [shape = 'f32[8,128]{1,0:T(8,128)}', space=vmem, size = 0x1000, scoped, tag = 'scratch operand']
  %s0 = inlined_call_operand.vmem [shape: f32[8,128], index: 0, kind: input, shape index: {}]
  %s1 = inlined_call_operand.hbm [shape: f32[128,128], index: 1, kind: input, shape index: {}]
  %s2 = inlined_call_operand.vmem [shape: f32[3,128], index: 2, kind: input, shape index: {}]
  %s3 = inlined_call_operand.hbm [shape: f32[8,128], index: 3, kind: output, shape index: {}]
  %s4 = sld [smem:[#allocation0]]
  $region34: #{linear_relu_bn_apply.1} parent=0
    _
  %s6 = ssub.s32 1, %s4
  %s7 = scalar_select 0, %s6, %s4
  $region1: #{linear_relu_bn_apply.1} parent=0
    #allocation3 [shape = 'u8[65536]{0}', space=vmem, size = 0x10000, scoped, tag = 'input window, operand 1, single buffered']
    #allocation4 [shape = 's32[1]{0}', space=sflag, size = 0x4, scoped, tag = 'scoped memory for linear_relu_bn_apply.1']
    #allocation5 [shape = 's32[1]{0}', space=sflag, size = 0x4, scoped, tag = 'scoped memory for linear_relu_bn_apply.1']
    #allocation6 [shape = 'u8[4096]{0}', space=vmem, size = 0x1000, scoped, tag = 'output window, operand 0, single buffered']
    %8 = vsyncpa [#allocation4], 0
    %9 = vsyncpa [#allocation5], 0
    // Predicated region
    $region2: #{linear_relu_bn_apply.1} parent=1 // pred_check
      _
    $region3: #{linear_relu_bn_apply.1} parent=1 // pred_check_branch
      %11 = sbr.rel (0) target = $region5
    $region4: #{linear_relu_bn_apply.1} parent=1 // pred_region
      _
    $region5: #{linear_relu_bn_apply.1} parent=1 // pred_fallthru
      _
    // Predicated region
    $region6: #{linear_relu_bn_apply.1} parent=1 // pred_check
      _
    $region7: #{linear_relu_bn_apply.1} parent=1 // pred_check_branch
      %13 = sbr.rel (0) target = $region9
    $region8: #{linear_relu_bn_apply.1} parent=1 // pred_region
      %s15 = ssub.s32 2048, 2048
      %16 = vsyncadd [#allocation4], %s15
      %s17 = sshll.u32 [#allocation3], 4
      %s18 = int_to_ptr.vmem [resolvable:$true] %s17
      %23 = dma.hbm_to_vmem [thread:$0]  %s1, 2048, %s18, [#allocation4], 128, 128, 8
    $region9: #{linear_relu_bn_apply.1} parent=1 // pred_fallthru
      _
    // Predicated region
    $region10: #{linear_relu_bn_apply.1} parent=1 // pred_check
      _
    $region11: #{linear_relu_bn_apply.1} parent=1 // pred_check_branch
      %25 = sbr.rel (0) target = $region13
    $region12: #{linear_relu_bn_apply.1} parent=1 // pred_region
      _
    $region13: #{linear_relu_bn_apply.1} parent=1 // pred_fallthru
      _
    // Predicated region
    $region14: #{linear_relu_bn_apply.1} parent=1 // pred_check
      _
    $region15: #{linear_relu_bn_apply.1} parent=1 // pred_check_branch
      %27 = sbr.rel (0) target = $region17
    $region16: #{linear_relu_bn_apply.1} parent=1 // pred_region
      %28 = dma.done [#allocation4], 2048
    $region17: #{linear_relu_bn_apply.1} parent=1 // pred_fallthru
      _
    %p29 = scmp.eq.s32.totalorder 0, 0
    // Predicated region
    $region18: #{linear_relu_bn_apply.1} parent=1 // pred_check
      %p30 = pneg %p29
    $region19: #{linear_relu_bn_apply.1} parent=1 // pred_check_branch
      %32 = sbr.rel (%p30) target = $region21
    $region20: #{linear_relu_bn_apply.1} parent=1 // pred_region
      %33 = vst [vmem:[#allocation2] sm:$0xff] 0.0
    $region21: #{linear_relu_bn_apply.1} parent=1 // pred_fallthru
      _
    %v34 = vld [vmem:[#allocation2] sm:$0xff]
    %v35 = vld [vmem:[%s0] sm:$0xff]
    %v36 = vld [vmem:[#allocation3] sm:$0xff]
    %v37 = vld [vmem:[#allocation3 + $0x8] sm:$0xff]
    %v38 = vld [vmem:[#allocation3 + $0x10] sm:$0xff]
    %v39 = vld [vmem:[#allocation3 + $0x18] sm:$0xff]
    %v40 = vld [vmem:[#allocation3 + $0x20] sm:$0xff]
    %v41 = vld [vmem:[#allocation3 + $0x28] sm:$0xff]
    %v42 = vld [vmem:[#allocation3 + $0x30] sm:$0xff]
    %v43 = vld [vmem:[#allocation3 + $0x38] sm:$0xff]
    %v44 = vld [vmem:[#allocation3 + $0x40] sm:$0xff]
    %v45 = vld [vmem:[#allocation3 + $0x48] sm:$0xff]
    %v46 = vld [vmem:[#allocation3 + $0x50] sm:$0xff]
    %v47 = vld [vmem:[#allocation3 + $0x58] sm:$0xff]
    %v48 = vld [vmem:[#allocation3 + $0x60] sm:$0xff]
    %v49 = vld [vmem:[#allocation3 + $0x68] sm:$0xff]
    %v50 = vld [vmem:[#allocation3 + $0x70] sm:$0xff]
    %v51 = vld [vmem:[#allocation3 + $0x78] sm:$0xff]
    %52 = vmatprep.subr.mxu0 0.0
    %53 = vmatpush1.msra.mxu0 %v51
    %54 = vmatprep.subr.mxu0 0.0
    %55 = vmatpush1.msra.mxu0 %v50
    %56 = vmatprep.subr.mxu0 0.0
    %57 = vmatpush1.msra.mxu0 %v49
    %58 = vmatprep.subr.mxu0 0.0
    %59 = vmatpush1.msra.mxu0 %v48
    %60 = vmatprep.subr.mxu0 0.0
    %61 = vmatpush1.msra.mxu0 %v47
    %62 = vmatprep.subr.mxu0 0.0
    %63 = vmatpush1.msra.mxu0 %v46
    %64 = vmatprep.subr.mxu0 0.0
    %65 = vmatpush1.msra.mxu0 %v45
    %66 = vmatprep.subr.mxu0 0.0
    %67 = vmatpush1.msra.mxu0 %v44
    %68 = vmatprep.subr.mxu0 0.0
    %69 = vmatpush1.msra.mxu0 %v43
    %70 = vmatprep.subr.mxu0 0.0
    %71 = vmatpush1.msra.mxu0 %v42
    %72 = vmatprep.subr.mxu0 0.0
    %73 = vmatpush1.msra.mxu0 %v41
    %74 = vmatprep.subr.mxu0 0.0
    %75 = vmatpush1.msra.mxu0 %v40
    %76 = vmatprep.subr.mxu0 0.0
    %77 = vmatpush1.msra.mxu0 %v39
    %78 = vmatprep.subr.mxu0 0.0
    %79 = vmatpush1.msra.mxu0 %v38
    %80 = vmatprep.subr.mxu0 0.0
    %81 = vmatpush1.msra.mxu0 %v37
    %82 = vmatprep.subr.mxu0 0.0
    %83 = vmatpush1.msra.mxu0 %v36
    %84 = vmatprep.subr.mxu0 0.0
    %85 = vmatpush2.msra.mxu0 0.0
    %86 = vmatprep.subr.mxu0 0.0
    %87 = vmatpush2.msra.mxu0 0.0
    %88 = vmatprep.subr.mxu0 0.0
    %89 = vmatpush2.msra.mxu0 0.0
    %90 = vmatprep.subr.mxu0 0.0
    %91 = vmatpush2.msra.mxu0 0.0
    %92 = vmatprep.subr.mxu0 0.0
    %93 = vmatpush2.msra.mxu0 0.0
    %94 = vmatprep.subr.mxu0 0.0
    %95 = vmatpush2.msra.mxu0 0.0
    %96 = vmatprep.subr.mxu0 0.0
    %97 = vmatpush2.msra.mxu0 0.0
    %98 = vmatprep.subr.mxu0 0.0
    %99 = vmatpush2.msra.mxu0 0.0
    %100 = vmatprep.subr.mxu0 0.0
    %101 = vmatpush2.msra.mxu0 0.0
    %102 = vmatprep.subr.mxu0 0.0
    %103 = vmatpush2.msra.mxu0 0.0
    %104 = vmatprep.subr.mxu0 0.0
    %105 = vmatpush2.msra.mxu0 0.0
    %106 = vmatprep.subr.mxu0 0.0
    %107 = vmatpush2.msra.mxu0 0.0
    %108 = vmatprep.subr.mxu0 0.0
    %109 = vmatpush2.msra.mxu0 0.0
    %110 = vmatprep.subr.mxu0 0.0
    %111 = vmatpush2.msra.mxu0 0.0
    %112 = vmatprep.subr.mxu0 0.0
    %113 = vmatpush2.msra.mxu0 0.0
    %114 = vmatprep.subr.mxu0 0.0
    %115 = vmatpush2.msra.mxu0 0.0
    %116 = vmatprep.mubr.f32.mxu0 0.0
    %117 = vmatmul.mubr.f32.gmra.mxu0 %v35
    %v118 = vpop.f32.mrf.mxu0
    %v119 = vadd.f32 0.0, %v118
    %v120 = vpop.f32.mrf.mxu0
    %121 = vdwg.mxu0
    %v122 = vadd.f32 %v34, %v119
    %123 = vst [vmem:[#allocation2] sm:$0xff] %v122
    // Predicated region
    $region22: #{linear_relu_bn_apply.1} parent=1 // pred_check
      %p124 = pneg %p29
    $region23: #{linear_relu_bn_apply.1} parent=1 // pred_check_branch
      %126 = sbr.rel (%p124) target = $region25
    $region24: #{linear_relu_bn_apply.1} parent=1 // pred_region
      %v127 = vld [vmem:[%s2] sm:$0x7]
      %v128 = vld [vmem:[#allocation2] sm:$0xff]
      %v129 = vlaneseq
      %v130 = vshrl.u32 %v129, 7
      %v131 = vsub.s32 0, %v130
      %v132 = vrot.slane %v127, %v131
      %v133 = vadd.f32 %v128, %v132
      %v134 = vmax.f32 %v133, 0.0
      %v135 = vrot.slane %v134, 4
      %v136 = vadd.f32 %v134, %v135
      %v137 = vrot.slane %v136, 2
      %v138 = vadd.f32 %v136, %v137
      %v139 = vrot.slane %v138, 1
      %v140 = vadd.f32 %v138, %v139
      %v141 = vmul.f32 %v140, 0.125
      %v142 = vsub.f32 %v134, %v141
      %v143 = vmul.f32 %v142, %v142
      %v144 = vrot.slane %v143, 4
      %v145 = vadd.f32 %v143, %v144
      %v146 = vrot.slane %v145, 2
      %v147 = vadd.f32 %v145, %v146
      %v148 = vrot.slane %v147, 1
      %v149 = vadd.f32 %v147, %v148
      %v150 = vmul.f32 %v149, 0.125
      %v151 = vadd.f32 %v150, 1e-05
      %v152 = vrsqrt.pop %v151
      %v153 = vmul.f32 %v127, %v152
      %v154 = vmul.f32 %v153, %v141
      %v156 = vrot.slane %v154, 7
      %v158 = vsub.f32 %v127, %v156
      %v159 = vlaneseq
      %v160 = vshrl.u32 %v159, 7
      %v161 = vsub.s32 1, %v160
      %v162 = vrot.slane %v153, %v161
      %v163 = vmul.f32 %v134, %v162
      %v164 = vlaneseq
      %v165 = vshrl.u32 %v164, 7
      %v166 = vsub.s32 2, %v165
      %v167 = vrot.slane %v158, %v166
      %v168 = vadd.f32 %v163, %v167
      %169 = vst [vmem:[#allocation6] sm:$0xff] %v168
    $region25: #{linear_relu_bn_apply.1} parent=1 // pred_fallthru
      _
    // Predicated region
    $region26: #{linear_relu_bn_apply.1} parent=1 // pred_check
      _
    $region27: #{linear_relu_bn_apply.1} parent=1 // pred_check_branch
      %171 = sbr.rel (0) target = $region29
    $region28: #{linear_relu_bn_apply.1} parent=1 // pred_region
      %s173 = ssub.s32 128, 128
      %174 = vsyncadd [#allocation5], %s173
      %s176 = sshll.u32 [#allocation6], 4
      %s177 = int_to_ptr.vmem [resolvable:$true] %s176
      %179 = dma.vmem_to_hbm [thread:$0]  %s177, 128, %s3, [#allocation5]
    $region29: #{linear_relu_bn_apply.1} parent=1 // pred_fallthru
      _
    // Predicated region
    $region30: #{linear_relu_bn_apply.1} parent=1 // pred_check
      _
    $region31: #{linear_relu_bn_apply.1} parent=1 // pred_check_branch
      %181 = sbr.rel (0) target = $region33
    $region32: #{linear_relu_bn_apply.1} parent=1 // pred_region
      %182 = dma.done [#allocation5], 128
    $region33: #{linear_relu_bn_apply.1} parent=1 // pred_fallthru
      _
    %183 = vsyncpa [#allocation4], 1
    %184 = vsyncpa [#allocation5], 1

</llo_original>
